<compile_context>
chip_gen: v6e
topology: v6e:2x2x1
jax: 0.10.0
libtpu: 0.0.40
codegen_flags: <defaults>
</compile_context>

<pallas_src>
import functools

import jax
import jax.numpy as jnp
from jax.experimental import pallas as pl


def _softplus(x):
    # Numerically stable softplus; exp/log1p run on the EUP slot.
    return jnp.maximum(x, 0.0) + jnp.log1p(jnp.exp(-jnp.abs(x)))


def _ensemble_kernel(x_ref, w1_ref, b1_ref, w2_ref, b2_ref, o_ref, *,
                     n_est, hidden, d_loc, probabilistic):
    """Whole deep-ensemble forward in a single grid step (grid=()).

    x_ref : (B, D_in)       shared input
    w1_ref: (D_in, N*H)     all members' first-layer weights, lane-packed
    b1_ref: (1, N*H)
    w2_ref: (N, H, D_tot)   D_tot = 2*D_out (loc|scale) if probabilistic else D_out
    b2_ref: (N, 1, D_tot)
    o_ref : (N, B, D_tot)
    """
    x = x_ref[...]                                        # (B, D_in)

    # One wide MXU matmul for ALL members' first layers.
    h = jnp.dot(x, w1_ref[...], preferred_element_type=jnp.float32)
    h = jnp.maximum(h + b1_ref[...], 0.0)                 # (B, N*H) ReLU

    batch = x.shape[0]
    d_tot = o_ref.shape[-1]
    if probabilistic:
        # Column mask selecting the loc half vs the softplus'd scale half
        # (hoisted out of the member loop).
        col = jax.lax.broadcasted_iota(jnp.int32, (batch, d_tot), 1)
        is_loc = col < d_loc

    # Second layer: per-member matmul on the resident h.  N is small and
    # static, so this unrolls into one big basic block (no grid overhead).
    for n in range(n_est):
        hn = h[:, n * hidden:(n + 1) * hidden]            # (B, H) static lane slice
        yn = jnp.dot(hn, w2_ref[n], preferred_element_type=jnp.float32)
        yn = yn + b2_ref[n]                               # (B, D_tot)
        if probabilistic:
            yn = jnp.where(is_loc, yn, _softplus(yn))     # softplus on scale half
        o_ref[n] = yn.astype(o_ref.dtype)


def _ensemble_forward(x, w1_packed, b1_packed, w2_packed, b2_packed, *,
                      n_est, hidden, d_loc, probabilistic):
    """One fused pallas_call for the full ensemble (both heads if probabilistic)."""
    batch = x.shape[0]
    d_tot = w2_packed.shape[-1]
    kernel = functools.partial(
        _ensemble_kernel, n_est=n_est, hidden=hidden, d_loc=d_loc,
        probabilistic=probabilistic)
    # grid=() / default specs: the whole (tiny) working set lives in VMEM.
    return pl.pallas_call(
        kernel,
        out_shape=jax.ShapeDtypeStruct((n_est, batch, d_tot), x.dtype),
    )(x, w1_packed, b1_packed, w2_packed, b2_packed)


class RegDeepEnsembles:
    """JAX/Pallas analogue of _RegDeepEnsembles(probabilistic, models)."""

    def __init__(self, probabilistic, num_estimators, d_in, hidden, d_out, key):
        self.probabilistic = probabilistic
        self.num_estimators = num_estimators
        self.hidden = hidden
        self.d_out = d_out

        ks = jax.random.split(key, 6)
        # Per-member parameters (same role as N independent nn.Modules).
        self.w1 = 0.1 * jax.random.normal(ks[0], (num_estimators, d_in, hidden), jnp.float32)
        self.b1 = 0.1 * jax.random.normal(ks[1], (num_estimators, 1, hidden), jnp.float32)
        self.w2_loc = 0.1 * jax.random.normal(ks[2], (num_estimators, hidden, d_out), jnp.float32)
        self.b2_loc = 0.1 * jax.random.normal(ks[3], (num_estimators, 1, d_out), jnp.float32)
        self.w2_scale = 0.1 * jax.random.normal(ks[4], (num_estimators, hidden, d_out), jnp.float32)
        self.b2_scale = 0.1 * jax.random.normal(ks[5], (num_estimators, 1, d_out), jnp.float32)

        # ---- wrapper-side packing (layout plumbing, done once at init) ----
        # First layer packed lane-wide: (D_in, N*H); column block n == W1[n].
        self.w1_packed = jnp.transpose(self.w1, (1, 0, 2)).reshape(
            d_in, num_estimators * hidden)
        self.b1_packed = self.b1.reshape(1, num_estimators * hidden)
        if probabilistic:
            # Fused loc|scale head: (N, H, 2*D_out) / (N, 1, 2*D_out).
            self.w2_packed = jnp.concatenate([self.w2_loc, self.w2_scale], axis=-1)
            self.b2_packed = jnp.concatenate([self.b2_loc, self.b2_scale], axis=-1)
        else:
            self.w2_packed = self.w2_loc
            self.b2_packed = self.b2_loc

    def __call__(self, x):
        out = _ensemble_forward(
            x, self.w1_packed, self.b1_packed, self.w2_packed, self.b2_packed,
            n_est=self.num_estimators, hidden=self.hidden, d_loc=self.d_out,
            probabilistic=self.probabilistic)             # (N, B, D_tot)
        n, b, _ = out.shape
        if self.probabilistic:
            # Split heads + merge (N, B)->N*B: torch.cat(..., dim=0) per key.
            return {
                "loc": out[..., :self.d_out].reshape(n * b, self.d_out),
                "scale": out[..., self.d_out:].reshape(n * b, self.d_out),
            }
        return out.reshape(n * b, self.d_out)             # torch.cat(..., dim=0)


def _reference_forward(x, w1, b1, w2, b2):
    """Pure-JAX reference of the per-member MLP + concat along dim 0."""
    outs = []
    for n in range(w1.shape[0]):
        h = jnp.maximum(x @ w1[n] + b1[n], 0.0)
        outs.append(h @ w2[n] + b2[n])
    return jnp.concatenate(outs, axis=0)


if __name__ == "__main__":
    key = jax.random.PRNGKey(0)
    k_x, k_p = jax.random.split(key)

    N_EST, B, D_IN, HID, D_OUT = 3, 8, 32, 64, 16
    x = jax.random.normal(k_x, (B, D_IN), jnp.float32)

    # Non-probabilistic deep ensemble: output shape (N*B, D_OUT).
    ens = RegDeepEnsembles(False, N_EST, D_IN, HID, D_OUT, k_p)
    out = jax.block_until_ready(ens(x))
    assert out.shape == (N_EST * B, D_OUT), out.shape
    ref = _reference_forward(x, ens.w1, ens.b1, ens.w2_loc, ens.b2_loc)
    assert jnp.allclose(out, ref, atol=1e-5, rtol=1e-5), "non-probabilistic mismatch"

    # Probabilistic deep ensemble: dict of (N*B, D_OUT) tensors.
    ens_p = RegDeepEnsembles(True, N_EST, D_IN, HID, D_OUT, k_p)
    out_p = ens_p(x)
    out_p = jax.tree_util.tree_map(jax.block_until_ready, out_p)
    assert set(out_p.keys()) == {"loc", "scale"}
    assert out_p["loc"].shape == (N_EST * B, D_OUT)
    assert out_p["scale"].shape == (N_EST * B, D_OUT)
    ref_loc = _reference_forward(x, ens_p.w1, ens_p.b1, ens_p.w2_loc, ens_p.b2_loc)
    ref_scale = jax.nn.softplus(
        _reference_forward(x, ens_p.w1, ens_p.b1, ens_p.w2_scale, ens_p.b2_scale))
    assert jnp.allclose(out_p["loc"], ref_loc, atol=1e-5, rtol=1e-5), "loc mismatch"
    assert jnp.allclose(out_p["scale"], ref_scale, atol=1e-5, rtol=1e-5), "scale mismatch"

    print("KERNEL_OK")
</pallas_src>

<mosaic_0001>
module attributes {stable_mosaic.version = 11 : i64} {
  func.func @_ensemble_kernel(%arg0: memref<8x32xf32, #tpu.memory_space<vmem>>, %arg1: memref<32x192xf32, #tpu.memory_space<vmem>>, %arg2: memref<1x192xf32, #tpu.memory_space<vmem>>, %arg3: memref<3x64x16xf32, #tpu.memory_space<vmem>>, %arg4: memref<3x1x16xf32, #tpu.memory_space<vmem>>, %arg5: memref<3x8x16xf32, #tpu.memory_space<vmem>>) attributes {dimension_semantics = [], scalar_prefetch = 0 : i64, scratch_operands = 0 : i64, tpu.core_type = #tpu.core_type<tc>} {
    %c0 = arith.constant 0 : index
    %c0_0 = arith.constant 0 : index
    %0 = vector.load %arg0[%c0, %c0_0] : memref<8x32xf32, #tpu.memory_space<vmem>>, vector<8x32xf32>
    %c0_1 = arith.constant 0 : index
    %c0_2 = arith.constant 0 : index
    %1 = vector.load %arg1[%c0_1, %c0_2] : memref<32x192xf32, #tpu.memory_space<vmem>>, vector<32x192xf32>
    %cst = arith.constant dense<0.000000e+00> : vector<8x192xf32>
    %2 = tpu.matmul %0, %1, %cst {dimension_numbers = #tpu.dot_dimension_numbers<[1], [0], [0], [1], [0, 0, 1, 1], [], []>} : vector<8x32xf32>, vector<32x192xf32>, vector<8x192xf32> -> vector<8x192xf32>
    %c0_3 = arith.constant 0 : index
    %c0_4 = arith.constant 0 : index
    %3 = vector.load %arg2[%c0_3, %c0_4] : memref<1x192xf32, #tpu.memory_space<vmem>>, vector<1x192xf32>
    %4 = vector.broadcast %3 : vector<1x192xf32> to vector<8x192xf32>
    %5 = arith.addf %2, %4 : vector<8x192xf32>
    %cst_5 = arith.constant 0.000000e+00 : f32
    %6 = vector.broadcast %cst_5 : f32 to vector<8x192xf32>
    %7 = arith.maximumf %5, %6 : vector<8x192xf32>
    %8 = vector.extract_strided_slice %7 {offsets = [0, 0], sizes = [8, 64], strides = [1, 1]} : vector<8x192xf32> to vector<8x64xf32>
    %c0_6 = arith.constant 0 : index
    %c0_7 = arith.constant 0 : index
    %c0_8 = arith.constant 0 : index
    %9 = vector.load %arg3[%c0_6, %c0_7, %c0_8] : memref<3x64x16xf32, #tpu.memory_space<vmem>>, vector<1x64x16xf32>
    %10 = vector.shape_cast %9 : vector<1x64x16xf32> to vector<64x16xf32>
    %cst_9 = arith.constant dense<0.000000e+00> : vector<8x16xf32>
    %11 = tpu.matmul %8, %10, %cst_9 {dimension_numbers = #tpu.dot_dimension_numbers<[1], [0], [0], [1], [0, 0, 1, 1], [], []>} : vector<8x64xf32>, vector<64x16xf32>, vector<8x16xf32> -> vector<8x16xf32>
    %c0_10 = arith.constant 0 : index
    %c0_11 = arith.constant 0 : index
    %c0_12 = arith.constant 0 : index
    %12 = vector.load %arg4[%c0_10, %c0_11, %c0_12] : memref<3x1x16xf32, #tpu.memory_space<vmem>>, vector<1x1x16xf32>
    %13 = vector.shape_cast %12 : vector<1x1x16xf32> to vector<1x16xf32>
    %14 = vector.broadcast %13 : vector<1x16xf32> to vector<8x16xf32>
    %15 = arith.addf %11, %14 : vector<8x16xf32>
    %c0_13 = arith.constant 0 : index
    %c0_14 = arith.constant 0 : index
    %c0_15 = arith.constant 0 : index
    %16 = vector.load %arg5[%c0_13, %c0_14, %c0_15] : memref<3x8x16xf32, #tpu.memory_space<vmem>>, vector<1x8x16xf32>
    %17 = vector.shape_cast %16 : vector<1x8x16xf32> to vector<8x16xf32>
    %18 = vector.shape_cast %15 : vector<8x16xf32> to vector<1x8x16xf32>
    tpu.vector_store %arg5[%c0_13, %c0_14, %c0_15], %18 {strides = array<i32>} : memref<3x8x16xf32, #tpu.memory_space<vmem>>, vector<1x8x16xf32>,
    %19 = vector.extract_strided_slice %7 {offsets = [0, 64], sizes = [8, 64], strides = [1, 1]} : vector<8x192xf32> to vector<8x64xf32>
    %c1 = arith.constant 1 : index
    %c0_16 = arith.constant 0 : index
    %c0_17 = arith.constant 0 : index
    %20 = vector.load %arg3[%c1, %c0_16, %c0_17] : memref<3x64x16xf32, #tpu.memory_space<vmem>>, vector<1x64x16xf32>
    %21 = vector.shape_cast %20 : vector<1x64x16xf32> to vector<64x16xf32>
    %cst_18 = arith.constant dense<0.000000e+00> : vector<8x16xf32>
    %22 = tpu.matmul %19, %21, %cst_18 {dimension_numbers = #tpu.dot_dimension_numbers<[1], [0], [0], [1], [0, 0, 1, 1], [], []>} : vector<8x64xf32>, vector<64x16xf32>, vector<8x16xf32> -> vector<8x16xf32>
    %c1_19 = arith.constant 1 : index
    %c0_20 = arith.constant 0 : index
    %c0_21 = arith.constant 0 : index
    %23 = vector.load %arg4[%c1_19, %c0_20, %c0_21] : memref<3x1x16xf32, #tpu.memory_space<vmem>>, vector<1x1x16xf32>
    %24 = vector.shape_cast %23 : vector<1x1x16xf32> to vector<1x16xf32>
    %25 = vector.broadcast %24 : vector<1x16xf32> to vector<8x16xf32>
    %26 = arith.addf %22, %25 : vector<8x16xf32>
    %c1_22 = arith.constant 1 : index
    %c0_23 = arith.constant 0 : index
    %c0_24 = arith.constant 0 : index
    %27 = vector.load %arg5[%c1_22, %c0_23, %c0_24] : memref<3x8x16xf32, #tpu.memory_space<vmem>>, vector<1x8x16xf32>
    %28 = vector.shape_cast %27 : vector<1x8x16xf32> to vector<8x16xf32>
    %29 = vector.shape_cast %26 : vector<8x16xf32> to vector<1x8x16xf32>
    tpu.vector_store %arg5[%c1_22, %c0_23, %c0_24], %29 {strides = array<i32>} : memref<3x8x16xf32, #tpu.memory_space<vmem>>, vector<1x8x16xf32>,
    %30 = vector.extract_strided_slice %7 {offsets = [0, 128], sizes = [8, 64], strides = [1, 1]} : vector<8x192xf32> to vector<8x64xf32>
    %c2 = arith.constant 2 : index
    %c0_25 = arith.constant 0 : index
    %c0_26 = arith.constant 0 : index
    %31 = vector.load %arg3[%c2, %c0_25, %c0_26] : memref<3x64x16xf32, #tpu.memory_space<vmem>>, vector<1x64x16xf32>
    %32 = vector.shape_cast %31 : vector<1x64x16xf32> to vector<64x16xf32>
    %cst_27 = arith.constant dense<0.000000e+00> : vector<8x16xf32>
    %33 = tpu.matmul %30, %32, %cst_27 {dimension_numbers = #tpu.dot_dimension_numbers<[1], [0], [0], [1], [0, 0, 1, 1], [], []>} : vector<8x64xf32>, vector<64x16xf32>, vector<8x16xf32> -> vector<8x16xf32>
    %c2_28 = arith.constant 2 : index
    %c0_29 = arith.constant 0 : index
    %c0_30 = arith.constant 0 : index
    %34 = vector.load %arg4[%c2_28, %c0_29, %c0_30] : memref<3x1x16xf32, #tpu.memory_space<vmem>>, vector<1x1x16xf32>
    %35 = vector.shape_cast %34 : vector<1x1x16xf32> to vector<1x16xf32>
    %36 = vector.broadcast %35 : vector<1x16xf32> to vector<8x16xf32>
    %37 = arith.addf %33, %36 : vector<8x16xf32>
    %c2_31 = arith.constant 2 : index
    %c0_32 = arith.constant 0 : index
    %c0_33 = arith.constant 0 : index
    %38 = vector.load %arg5[%c2_31, %c0_32, %c0_33] : memref<3x8x16xf32, #tpu.memory_space<vmem>>, vector<1x8x16xf32>
    %39 = vector.shape_cast %38 : vector<1x8x16xf32> to vector<8x16xf32>
    %40 = vector.shape_cast %37 : vector<8x16xf32> to vector<1x8x16xf32>
    tpu.vector_store %arg5[%c2_31, %c0_32, %c0_33], %40 {strides = array<i32>} : memref<3x8x16xf32, #tpu.memory_space<vmem>>, vector<1x8x16xf32>,
    return
  }
}

</mosaic_0001>

<llo_original>
// kernel: tpu_custom_call.1
$region0: #{tpu_custom_call.1}
  #allocation0 [shape = 'u32[]', space=smem, size = 0x4, offset = 0x4, fixed_abs, tag = 'smem constant byte address 0x4 - core index']
  #allocation1 [shape = 'u32[144,128]{1,0:T(1,128)}', space=vmem, size = 0x12000, scoped, tag = 'internal scratch']
  %s0 = inlined_call_operand.vmem [shape: f32[8,32], index: 0, kind: input, shape index: {}]
  %s1 = inlined_call_operand.vmem [shape: f32[32,192], index: 1, kind: input, shape index: {}]
  %s2 = inlined_call_operand.vmem [shape: f32[1,192], index: 2, kind: input, shape index: {}]
  %s3 = inlined_call_operand.vmem [shape: f32[3,64,16], index: 3, kind: input, shape index: {}]
  %s4 = inlined_call_operand.vmem [shape: f32[3,1,16], index: 4, kind: input, shape index: {}]
  %s5 = inlined_call_operand.hbm [shape: f32[3,8,16], index: 5, kind: output, shape index: {}]
  %s6 = sld [smem:[#allocation0]]
  $region30: #{tpu_custom_call.1} parent=0
    _
  %s8 = ssub.s32 1, %s6
  %s9 = scalar_select 0, %s8, %s6
  $region1: #{tpu_custom_call.1} parent=0
    #allocation2 [shape = 'u8[12288]{0}', space=vmem, size = 0x3000, scoped, tag = 'output window, operand 0, single buffered']
    #allocation3 [shape = 's32[1]{0}', space=sflag, size = 0x4, scoped, tag = 'scoped memory for tpu_custom_call.1']
    %10 = vsyncpa [#allocation3], 0
    // Predicated region
    $region2: #{tpu_custom_call.1} parent=1 // pred_check
      _
    $region3: #{tpu_custom_call.1} parent=1 // pred_check_branch
      %12 = sbr.rel (0) target = $region5
    $region4: #{tpu_custom_call.1} parent=1 // pred_region
      _
    $region5: #{tpu_custom_call.1} parent=1 // pred_fallthru
      _
    // Predicated region
    $region6: #{tpu_custom_call.1} parent=1 // pred_check
      _
    $region7: #{tpu_custom_call.1} parent=1 // pred_check_branch
      %14 = sbr.rel (0) target = $region9
    $region8: #{tpu_custom_call.1} parent=1 // pred_region
      _
    $region9: #{tpu_custom_call.1} parent=1 // pred_fallthru
      _
    // Predicated region
    $region10: #{tpu_custom_call.1} parent=1 // pred_check
      _
    $region11: #{tpu_custom_call.1} parent=1 // pred_check_branch
      %16 = sbr.rel (0) target = $region13
    $region12: #{tpu_custom_call.1} parent=1 // pred_region
      _
    $region13: #{tpu_custom_call.1} parent=1 // pred_fallthru
      _
    // Predicated region
    $region14: #{tpu_custom_call.1} parent=1 // pred_check
      _
    $region15: #{tpu_custom_call.1} parent=1 // pred_check_branch
      %18 = sbr.rel (0) target = $region17
    $region16: #{tpu_custom_call.1} parent=1 // pred_region
      _
    $region17: #{tpu_custom_call.1} parent=1 // pred_fallthru
      _
    // Predicated region
    $region18: #{tpu_custom_call.1} parent=1 // pred_check
      _
    $region19: #{tpu_custom_call.1} parent=1 // pred_check_branch
      %20 = sbr.rel (0) target = $region21
    $region20: #{tpu_custom_call.1} parent=1 // pred_region
      _
    $region21: #{tpu_custom_call.1} parent=1 // pred_fallthru
      _
    %v21 = vld [vmem:[%s0] sm:$0xff]
    %v22 = vld [vmem:[%s1] sm:$0xff]
    %v23 = vld [vmem:[%s1 + $0x8] sm:$0xff]
    %v24 = vld [vmem:[%s1 + $0x10] sm:$0xff]
    %v25 = vld [vmem:[%s1 + $0x18] sm:$0xff]
    %v26 = vld [vmem:[%s1 + $0x20] sm:$0xff]
    %v27 = vld [vmem:[%s1 + $0x28] sm:$0xff]
    %v28 = vld [vmem:[%s1 + $0x30] sm:$0xff]
    %v29 = vld [vmem:[%s1 + $0x38] sm:$0xff]
    %v30 = vld [vmem:[%s2] sm:$0x3]
    %v32 = vlaneseq
    %v33 = vshrl.u32 %v32, 7
    %v34 = vsub.s32 0, %v33
    %v35 = vrot.slane %v30, %v34
    %v36 = vlaneseq
    %v37 = vshrl.u32 %v36, 7
    %v38 = vsub.s32 1, %v37
    %v39 = vrot.slane %v30, %v38
    %vm42 = vcmask 261120
    %v44 = vsel %vm42, %v21, 0
    %46 = vmatprep.subr.mxu0 0.0
    %47 = vmatpush1.msra.mxu0 0.0
    %48 = vmatprep.subr.mxu0 0.0
    %49 = vmatpush1.msra.mxu0 0.0
    %50 = vmatprep.subr.mxu0 0.0
    %51 = vmatpush1.msra.mxu0 0.0
    %52 = vmatprep.subr.mxu0 0.0
    %53 = vmatpush1.msra.mxu0 0.0
    %54 = vmatprep.subr.mxu0 0.0
    %55 = vmatpush1.msra.mxu0 0.0
    %56 = vmatprep.subr.mxu0 0.0
    %57 = vmatpush1.msra.mxu0 0.0
    %58 = vmatprep.subr.mxu0 0.0
    %59 = vmatpush1.msra.mxu0 0.0
    %60 = vmatprep.subr.mxu0 0.0
    %61 = vmatpush1.msra.mxu0 0.0
    %62 = vmatprep.subr.mxu0 0.0
    %63 = vmatpush1.msra.mxu0 0.0
    %64 = vmatprep.subr.mxu0 0.0
    %65 = vmatpush1.msra.mxu0 0.0
    %66 = vmatprep.subr.mxu0 0.0
    %67 = vmatpush1.msra.mxu0 0.0
    %68 = vmatprep.subr.mxu0 0.0
    %69 = vmatpush1.msra.mxu0 0.0
    %70 = vmatprep.subr.mxu0 %v29
    %71 = vmatpush1.msra.mxu0 %v28
    %72 = vmatprep.subr.mxu0 %v27
    %73 = vmatpush1.msra.mxu0 %v26
    %74 = vmatprep.subr.mxu0 %v25
    %75 = vmatpush1.msra.mxu0 %v24
    %76 = vmatprep.subr.mxu0 %v23
    %77 = vmatpush1.msra.mxu0 %v22
    %78 = vmatprep.subr.mxu0 0.0
    %79 = vmatpush2.msra.mxu0 0.0
    %80 = vmatprep.subr.mxu0 0.0
    %81 = vmatpush2.msra.mxu0 0.0
    %82 = vmatprep.subr.mxu0 0.0
    %83 = vmatpush2.msra.mxu0 0.0
    %84 = vmatprep.subr.mxu0 0.0
    %85 = vmatpush2.msra.mxu0 0.0
    %86 = vmatprep.subr.mxu0 0.0
    %87 = vmatpush2.msra.mxu0 0.0
    %88 = vmatprep.subr.mxu0 0.0
    %89 = vmatpush2.msra.mxu0 0.0
    %90 = vmatprep.subr.mxu0 0.0
    %91 = vmatpush2.msra.mxu0 0.0
    %92 = vmatprep.subr.mxu0 0.0
    %93 = vmatpush2.msra.mxu0 0.0
    %94 = vmatprep.subr.mxu0 0.0
    %95 = vmatpush2.msra.mxu0 0.0
    %96 = vmatprep.subr.mxu0 0.0
    %97 = vmatpush2.msra.mxu0 0.0
    %98 = vmatprep.subr.mxu0 0.0
    %99 = vmatpush2.msra.mxu0 0.0
    %100 = vmatprep.subr.mxu0 0.0
    %101 = vmatpush2.msra.mxu0 0.0
    %102 = vmatprep.subr.mxu0 0.0
    %103 = vmatpush2.msra.mxu0 0.0
    %104 = vmatprep.subr.mxu0 0.0
    %105 = vmatpush2.msra.mxu0 0.0
    %106 = vmatprep.subr.mxu0 0.0
    %107 = vmatpush2.msra.mxu0 0.0
    %108 = vmatprep.subr.mxu0 0.0
    %109 = vmatpush2.msra.mxu0 0.0
    %110 = vmatprep.mubr.f32.mxu0 0.0
    %111 = vmatmul.mubr.f32.gmra.mxu0 %v44
    %v112 = vpop.f32.mrf.mxu0
    %v113 = vadd.f32 %v35, %v112
    %v114 = vpop.f32.mrf.mxu0
    %v115 = vadd.f32 %v39, %v114
    %116 = vdwg.mxu0
    %v117 = vmax.f32 %v113, 0.0
    %v118 = vmax.f32 %v115, 0.0
    %v119 = vld [vmem:[%s3] sm:$0xff]
    %v120 = vld [vmem:[%s3 + $0x8] sm:$0xff]
    %v121 = vld [vmem:[%s3 + $0x10] sm:$0xff]
    %v122 = vld [vmem:[%s3 + $0x18] sm:$0xff]
    %v123 = vld [vmem:[%s3 + $0x20] sm:$0xff]
    %v124 = vld [vmem:[%s3 + $0x28] sm:$0xff]
    %v125 = vld [vmem:[%s3 + $0x30] sm:$0xff]
    %v126 = vld [vmem:[%s3 + $0x38] sm:$0xff]
    %v127 = vld [vmem:[%s4] sm:$0x1]
    %v129 = vlaneseq
    %v130 = vshrl.u32 %v129, 7
    %v131 = vsub.s32 0, %v130
    %v132 = vrot.slane %v127, %v131
    %vm134 = vcmask 523264
    %v136 = vsel %vm134, %v117, 0
    %138 = vmatprep.subr.mxu0 0.0
    %139 = vmatpush1.msra.mxu0 0.0
    %140 = vmatprep.subr.mxu0 0.0
    %141 = vmatpush1.msra.mxu0 0.0
    %142 = vmatprep.subr.mxu0 0.0
    %143 = vmatpush1.msra.mxu0 0.0
    %144 = vmatprep.subr.mxu0 0.0
    %145 = vmatpush1.msra.mxu0 0.0
    %146 = vmatprep.subr.mxu0 0.0
    %147 = vmatpush1.msra.mxu0 0.0
    %148 = vmatprep.subr.mxu0 0.0
    %149 = vmatpush1.msra.mxu0 0.0
    %150 = vmatprep.subr.mxu0 0.0
    %151 = vmatpush1.msra.mxu0 0.0
    %152 = vmatprep.subr.mxu0 0.0
    %153 = vmatpush1.msra.mxu0 0.0
    %154 = vmatprep.subr.mxu0 0.0
    %155 = vmatpush1.msra.mxu0 %v126
    %156 = vmatprep.subr.mxu0 0.0
    %157 = vmatpush1.msra.mxu0 %v125
    %158 = vmatprep.subr.mxu0 0.0
    %159 = vmatpush1.msra.mxu0 %v124
    %160 = vmatprep.subr.mxu0 0.0
    %161 = vmatpush1.msra.mxu0 %v123
    %162 = vmatprep.subr.mxu0 0.0
    %163 = vmatpush1.msra.mxu0 %v122
    %164 = vmatprep.subr.mxu0 0.0
    %165 = vmatpush1.msra.mxu0 %v121
    %166 = vmatprep.subr.mxu0 0.0
    %167 = vmatpush1.msra.mxu0 %v120
    %168 = vmatprep.subr.mxu0 0.0
    %169 = vmatpush1.msra.mxu0 %v119
    %170 = vmatprep.subr.mxu0 0.0
    %171 = vmatpush2.msra.mxu0 0.0
    %172 = vmatprep.subr.mxu0 0.0
    %173 = vmatpush2.msra.mxu0 0.0
    %174 = vmatprep.subr.mxu0 0.0
    %175 = vmatpush2.msra.mxu0 0.0
    %176 = vmatprep.subr.mxu0 0.0
    %177 = vmatpush2.msra.mxu0 0.0
    %178 = vmatprep.subr.mxu0 0.0
    %179 = vmatpush2.msra.mxu0 0.0
    %180 = vmatprep.subr.mxu0 0.0
    %181 = vmatpush2.msra.mxu0 0.0
    %182 = vmatprep.subr.mxu0 0.0
    %183 = vmatpush2.msra.mxu0 0.0
    %184 = vmatprep.subr.mxu0 0.0
    %185 = vmatpush2.msra.mxu0 0.0
    %186 = vmatprep.subr.mxu0 0.0
    %187 = vmatpush2.msra.mxu0 0.0
    %188 = vmatprep.subr.mxu0 0.0
    %189 = vmatpush2.msra.mxu0 0.0
    %190 = vmatprep.subr.mxu0 0.0
    %191 = vmatpush2.msra.mxu0 0.0
    %192 = vmatprep.subr.mxu0 0.0
    %193 = vmatpush2.msra.mxu0 0.0
    %194 = vmatprep.subr.mxu0 0.0
    %195 = vmatpush2.msra.mxu0 0.0
    %196 = vmatprep.subr.mxu0 0.0
    %197 = vmatpush2.msra.mxu0 0.0
    %198 = vmatprep.subr.mxu0 0.0
    %199 = vmatpush2.msra.mxu0 0.0
    %200 = vmatprep.subr.mxu0 0.0
    %201 = vmatpush2.msra.mxu0 0.0
    %202 = vmatprep.mubr.f32.mxu0 0.0
    %203 = vmatmul.mubr.f32.gmra.mxu0 %v136
    %v204 = vpop.f32.mrf.mxu0
    %v205 = vadd.f32 %v132, %v204
    %v206 = vpop.f32.mrf.mxu0
    %207 = vdwg.mxu0
    %vm208 = vcmask 130048
    %209 = vst.msk [vmem:[#allocation2] sm:$0xff] %vm208, %v205
    %s210 = scalar_lea.vmem %s3, 64
    %v211 = vld [vmem:[%s210] sm:$0xff]
    %v212 = vld [vmem:[%s210 + $0x8] sm:$0xff]
    %v213 = vld [vmem:[%s210 + $0x10] sm:$0xff]
    %v214 = vld [vmem:[%s210 + $0x18] sm:$0xff]
    %v215 = vld [vmem:[%s210 + $0x20] sm:$0xff]
    %v216 = vld [vmem:[%s210 + $0x28] sm:$0xff]
    %v217 = vld [vmem:[%s210 + $0x30] sm:$0xff]
    %v218 = vld [vmem:[%s210 + $0x38] sm:$0xff]
    %s219 = scalar_lea.vmem %s4, 1
    %v220 = vld [vmem:[%s219] sm:$0x1]
    %v222 = vlaneseq
    %v223 = vshrl.u32 %v222, 7
    %v224 = vsub.s32 0, %v223
    %v225 = vrot.slane %v220, %v224
    %227 = vrot.lane.b32.xlu0 %v117, 64
    %v228 = vpop.permute.xlu0 %227
    %v229 = vsel %vm134, %v228, 0
    %231 = vmatprep.subr.mxu0 0.0
    %232 = vmatpush1.msra.mxu0 0.0
    %233 = vmatprep.subr.mxu0 0.0
    %234 = vmatpush1.msra.mxu0 0.0
    %235 = vmatprep.subr.mxu0 0.0
    %236 = vmatpush1.msra.mxu0 0.0
    %237 = vmatprep.subr.mxu0 0.0
    %238 = vmatpush1.msra.mxu0 0.0
    %239 = vmatprep.subr.mxu0 0.0
    %240 = vmatpush1.msra.mxu0 0.0
    %241 = vmatprep.subr.mxu0 0.0
    %242 = vmatpush1.msra.mxu0 0.0
    %243 = vmatprep.subr.mxu0 0.0
    %244 = vmatpush1.msra.mxu0 0.0
    %245 = vmatprep.subr.mxu0 0.0
    %246 = vmatpush1.msra.mxu0 0.0
    %247 = vmatprep.subr.mxu0 0.0
    %248 = vmatpush1.msra.mxu0 %v218
    %249 = vmatprep.subr.mxu0 0.0
    %250 = vmatpush1.msra.mxu0 %v217
    %251 = vmatprep.subr.mxu0 0.0
    %252 = vmatpush1.msra.mxu0 %v216
    %253 = vmatprep.subr.mxu0 0.0
    %254 = vmatpush1.msra.mxu0 %v215
    %255 = vmatprep.subr.mxu0 0.0
    %256 = vmatpush1.msra.mxu0 %v214
    %257 = vmatprep.subr.mxu0 0.0
    %258 = vmatpush1.msra.mxu0 %v213
    %259 = vmatprep.subr.mxu0 0.0
    %260 = vmatpush1.msra.mxu0 %v212
    %261 = vmatprep.subr.mxu0 0.0
    %262 = vmatpush1.msra.mxu0 %v211
    %263 = vmatprep.subr.mxu0 0.0
    %264 = vmatpush2.msra.mxu0 0.0
    %265 = vmatprep.subr.mxu0 0.0
    %266 = vmatpush2.msra.mxu0 0.0
    %267 = vmatprep.subr.mxu0 0.0
    %268 = vmatpush2.msra.mxu0 0.0
    %269 = vmatprep.subr.mxu0 0.0
    %270 = vmatpush2.msra.mxu0 0.0
    %271 = vmatprep.subr.mxu0 0.0
    %272 = vmatpush2.msra.mxu0 0.0
    %273 = vmatprep.subr.mxu0 0.0
    %274 = vmatpush2.msra.mxu0 0.0
    %275 = vmatprep.subr.mxu0 0.0
    %276 = vmatpush2.msra.mxu0 0.0
    %277 = vmatprep.subr.mxu0 0.0
    %278 = vmatpush2.msra.mxu0 0.0
    %279 = vmatprep.subr.mxu0 0.0
    %280 = vmatpush2.msra.mxu0 0.0
    %281 = vmatprep.subr.mxu0 0.0
    %282 = vmatpush2.msra.mxu0 0.0
    %283 = vmatprep.subr.mxu0 0.0
    %284 = vmatpush2.msra.mxu0 0.0
    %285 = vmatprep.subr.mxu0 0.0
    %286 = vmatpush2.msra.mxu0 0.0
    %287 = vmatprep.subr.mxu0 0.0
    %288 = vmatpush2.msra.mxu0 0.0
    %289 = vmatprep.subr.mxu0 0.0
    %290 = vmatpush2.msra.mxu0 0.0
    %291 = vmatprep.subr.mxu0 0.0
    %292 = vmatpush2.msra.mxu0 0.0
    %293 = vmatprep.subr.mxu0 0.0
    %294 = vmatpush2.msra.mxu0 0.0
    %295 = vmatprep.mubr.f32.mxu0 0.0
    %296 = vmatmul.mubr.f32.gmra.mxu0 %v229
    %v297 = vpop.f32.mrf.mxu0
    %v298 = vadd.f32 %v225, %v297
    %v299 = vpop.f32.mrf.mxu0
    %300 = vdwg.mxu0
    %s301 = scalar_lea.vmem [#allocation2], 8
    %302 = vst.msk [vmem:[%s301] sm:$0xff] %vm208, %v298
    %s303 = scalar_lea.vmem %s3, 128
    %v304 = vld [vmem:[%s303] sm:$0xff]
    %v305 = vld [vmem:[%s303 + $0x8] sm:$0xff]
    %v306 = vld [vmem:[%s303 + $0x10] sm:$0xff]
    %v307 = vld [vmem:[%s303 + $0x18] sm:$0xff]
    %v308 = vld [vmem:[%s303 + $0x20] sm:$0xff]
    %v309 = vld [vmem:[%s303 + $0x28] sm:$0xff]
    %v310 = vld [vmem:[%s303 + $0x30] sm:$0xff]
    %v311 = vld [vmem:[%s303 + $0x38] sm:$0xff]
    %s312 = scalar_lea.vmem %s4, 2
    %v313 = vld [vmem:[%s312] sm:$0x1]
    %v315 = vlaneseq
    %v316 = vshrl.u32 %v315, 7
    %v317 = vsub.s32 0, %v316
    %v318 = vrot.slane %v313, %v317
    %v321 = vsel %vm134, %v118, 0
    %323 = vmatprep.subr.mxu0 0.0
    %324 = vmatpush1.msra.mxu0 0.0
    %325 = vmatprep.subr.mxu0 0.0
    %326 = vmatpush1.msra.mxu0 0.0
    %327 = vmatprep.subr.mxu0 0.0
    %328 = vmatpush1.msra.mxu0 0.0
    %329 = vmatprep.subr.mxu0 0.0
    %330 = vmatpush1.msra.mxu0 0.0
    %331 = vmatprep.subr.mxu0 0.0
    %332 = vmatpush1.msra.mxu0 0.0
    %333 = vmatprep.subr.mxu0 0.0
    %334 = vmatpush1.msra.mxu0 0.0
    %335 = vmatprep.subr.mxu0 0.0
    %336 = vmatpush1.msra.mxu0 0.0
    %337 = vmatprep.subr.mxu0 0.0
    %338 = vmatpush1.msra.mxu0 0.0
    %339 = vmatprep.subr.mxu0 0.0
    %340 = vmatpush1.msra.mxu0 %v311
    %341 = vmatprep.subr.mxu0 0.0
    %342 = vmatpush1.msra.mxu0 %v310
    %343 = vmatprep.subr.mxu0 0.0
    %344 = vmatpush1.msra.mxu0 %v309
    %345 = vmatprep.subr.mxu0 0.0
    %346 = vmatpush1.msra.mxu0 %v308
    %347 = vmatprep.subr.mxu0 0.0
    %348 = vmatpush1.msra.mxu0 %v307
    %349 = vmatprep.subr.mxu0 0.0
    %350 = vmatpush1.msra.mxu0 %v306
    %351 = vmatprep.subr.mxu0 0.0
    %352 = vmatpush1.msra.mxu0 %v305
    %353 = vmatprep.subr.mxu0 0.0
    %354 = vmatpush1.msra.mxu0 %v304
    %355 = vmatprep.subr.mxu0 0.0
    %356 = vmatpush2.msra.mxu0 0.0
    %357 = vmatprep.subr.mxu0 0.0
    %358 = vmatpush2.msra.mxu0 0.0
    %359 = vmatprep.subr.mxu0 0.0
    %360 = vmatpush2.msra.mxu0 0.0
    %361 = vmatprep.subr.mxu0 0.0
    %362 = vmatpush2.msra.mxu0 0.0
    %363 = vmatprep.subr.mxu0 0.0
    %364 = vmatpush2.msra.mxu0 0.0
    %365 = vmatprep.subr.mxu0 0.0
    %366 = vmatpush2.msra.mxu0 0.0
    %367 = vmatprep.subr.mxu0 0.0
    %368 = vmatpush2.msra.mxu0 0.0
    %369 = vmatprep.subr.mxu0 0.0
    %370 = vmatpush2.msra.mxu0 0.0
    %371 = vmatprep.subr.mxu0 0.0
    %372 = vmatpush2.msra.mxu0 0.0
    %373 = vmatprep.subr.mxu0 0.0
    %374 = vmatpush2.msra.mxu0 0.0
    %375 = vmatprep.subr.mxu0 0.0
    %376 = vmatpush2.msra.mxu0 0.0
    %377 = vmatprep.subr.mxu0 0.0
    %378 = vmatpush2.msra.mxu0 0.0
    %379 = vmatprep.subr.mxu0 0.0
    %380 = vmatpush2.msra.mxu0 0.0
    %381 = vmatprep.subr.mxu0 0.0
    %382 = vmatpush2.msra.mxu0 0.0
    %383 = vmatprep.subr.mxu0 0.0
    %384 = vmatpush2.msra.mxu0 0.0
    %385 = vmatprep.subr.mxu0 0.0
    %386 = vmatpush2.msra.mxu0 0.0
    %387 = vmatprep.mubr.f32.mxu0 0.0
    %388 = vmatmul.mubr.f32.gmra.mxu0 %v321
    %v389 = vpop.f32.mrf.mxu0
    %v390 = vadd.f32 %v318, %v389
    %v391 = vpop.f32.mrf.mxu0
    %392 = vdwg.mxu0
    %s393 = scalar_lea.vmem [#allocation2], 16
    %394 = vst.msk [vmem:[%s393] sm:$0xff] %vm208, %v390
    // Predicated region
    $region22: #{tpu_custom_call.1} parent=1 // pred_check
      _
    $region23: #{tpu_custom_call.1} parent=1 // pred_check_branch
      %396 = sbr.rel (0) target = $region25
    $region24: #{tpu_custom_call.1} parent=1 // pred_region
      %s398 = ssub.s32 384, 384
      %399 = vsyncadd [#allocation3], %s398
      %s400 = sshll.u32 [#allocation2], 4
      %s401 = int_to_ptr.vmem [resolvable:$true] %s400
      %406 = dma.vmem_to_hbm [thread:$0]  %s401, 384, %s5, [#allocation3], 128, 128, 8
    $region25: #{tpu_custom_call.1} parent=1 // pred_fallthru
      _
    // Predicated region
    $region26: #{tpu_custom_call.1} parent=1 // pred_check
      _
    $region27: #{tpu_custom_call.1} parent=1 // pred_check_branch
      %408 = sbr.rel (0) target = $region29
    $region28: #{tpu_custom_call.1} parent=1 // pred_region
      %409 = dma.done [#allocation3], 384
    $region29: #{tpu_custom_call.1} parent=1 // pred_fallthru
      _
    %410 = vsyncpa [#allocation3], 1

</llo_original>
